<compile_context>
chip_gen: v7x
topology: tpu7x:2x2x1
jax: 0.10.0
libtpu: 0.0.40
codegen_flags: <defaults>
</compile_context>

<pallas_src>
import jax
import jax.numpy as jnp
from jax import lax
from jax.experimental import pallas as pl
from jax.experimental.pallas import tpu as pltpu

EPS = 1e-5  # nn.LayerNorm default


def prenorm_kernel(x_ref, gamma_ref, beta_ref, wt_ref, bias_ref, o_ref, xn_ref):
    # x_ref:     (TM, D)   tile of input rows
    # gamma_ref: (1, D)    LayerNorm weight
    # beta_ref:  (1, D)    LayerNorm bias
    # wt_ref:    (D, TN)   Linear weight tile, pre-transposed to (in, out)
    # bias_ref:  (1, TN)   Linear bias tile
    # o_ref:     (TM, TN)  output tile
    # xn_ref:    (TM, D)   VMEM scratch: cached LayerNorm output in MXU dtype

    # LayerNorm (f32 statistics, biased variance, matching torch) is computed
    # only on the first output-column step of each row tile and cached; the
    # remaining j steps reuse the scratch.
    @pl.when(pl.program_id(1) == 0)
    def _():
        x = x_ref[...].astype(jnp.float32)
        mean = jnp.mean(x, axis=-1, keepdims=True)
        centered = x - mean
        var = jnp.mean(centered * centered, axis=-1, keepdims=True)
        xn = centered * lax.rsqrt(var + EPS)
        xn = xn * gamma_ref[...].astype(jnp.float32) + beta_ref[...].astype(jnp.float32)
        xn_ref[...] = xn.astype(xn_ref.dtype)

    # fn: Linear.  Plain (TM,D)x(D,TN) MXU matmul (weight pre-transposed in
    # the wrapper, so no per-step XLU transpose); bf16 operands, f32 accumulate.
    y = jnp.dot(xn_ref[...], wt_ref[...], preferred_element_type=jnp.float32)
    o_ref[...] = (y + bias_ref[...].astype(jnp.float32)).astype(o_ref.dtype)


def _round_up(x, m):
    return (x + m - 1) // m * m


def _sublane(dtype):
    # Minimum sublane granularity: 8 for 4-byte, 16 for 2-byte, 32 for 1-byte.
    return max(8, 32 // jnp.dtype(dtype).itemsize)


def _vmem_budget_bytes():
    # v5e/v6e: 128 MiB physical -> ~96-100 MiB budget.
    # v7x:      64 MiB physical -> ~48 MiB budget (compiler headroom kept).
    try:
        cap = getattr(pltpu.get_tpu_info(), "vmem_capacity_bytes", None)
        if cap:
            return min(int(cap * 0.75), 100 * 1024 * 1024)
    except Exception:
        pass
    return 48 * 1024 * 1024  # conservative (v7x-safe) fallback


def _select_tiles(N, D, D_out, x_bytes, w_bytes, out_bytes, budget, sub):
    # tn: keep the whole (D, D_out) weight resident whenever it fits in a
    # quarter of the budget -> its block index never changes, so the weight
    # is DMA'd from HBM exactly once for the whole kernel.
    if D_out <= 512 or 2 * D * D_out * w_bytes <= budget // 4:
        tn = D_out
    else:
        tn = 512

    # tm: largest tile whose working set fits.  Bigger tm = fewer full-weight
    # HBM re-reads (traffic ~ (N/tm) * D_out * D * w_bytes), the dominant
    # mem-bound term for long sequences.
    tm = 8
    for cand in (1024, 512, 256, 128, 64, 32, 16, 8):
        need = (2 * cand * D * x_bytes        # double-buffered x tile
                + 2 * D * tn * w_bytes        # double-buffered weight tile
                + 2 * cand * tn * out_bytes   # double-buffered output tile
                + cand * D * w_bytes          # cached xn scratch
                + 2 * cand * D * 4)           # f32 LN temporaries headroom
        if need <= budget:
            tm = cand
            break

    if tm >= N:
        if tn == D_out and N >= 4 * sub:
            # Weight stays resident either way, so splitting the rows into
            # >= 2 tiles is free in HBM terms and feeds both v7x TensorCores
            # through the "parallel" i axis.
            tm = _round_up((N + 1) // 2, sub)
        else:
            tm = N  # full-array block is always a legal block shape
    else:
        tm = max(sub, (tm // sub) * sub)
    return tm, tn


def prenorm_linear(x, gamma, beta, w, bias, *,
                   mxu_dtype=jnp.bfloat16, tm=None, tn=None, vmem_budget=None):
    """fn(LayerNorm(x)) with fn = Linear.  x: (B,S,D); w: (D_out, D) torch layout.

    mxu_dtype: dtype of the matmul operands (accumulation is always f32).
    bf16 default: v5e/v6e/v7x MXUs are bf16-native and it halves weight
    HBM/VMEM traffic.  Pass jnp.float32 for a bit-faithful f32 matmul.
    """
    B, S, D = x.shape
    D_out, D_in = w.shape
    assert D_in == D, (D_in, D)
    N = B * S

    x2 = x.reshape(N, D)
    gamma2 = gamma.reshape(1, D)
    beta2 = beta.reshape(1, D)
    bias2 = bias.reshape(1, D_out)
    # One-time HBM transpose + cast of the torch-layout (out, in) weight to
    # (in, out): the in-kernel contraction becomes a plain MXU matmul with no
    # per-step XLU weight transpose, and bf16 storage halves every weight DMA.
    wt = jnp.asarray(w, dtype=mxu_dtype).T

    budget = _vmem_budget_bytes() if vmem_budget is None else vmem_budget
    sub = max(_sublane(x.dtype), _sublane(mxu_dtype))
    auto_tm, auto_tn = _select_tiles(
        N, D, D_out,
        jnp.dtype(x.dtype).itemsize,
        jnp.dtype(mxu_dtype).itemsize,
        jnp.dtype(x.dtype).itemsize,
        budget, sub)
    if tm is None:
        tm = auto_tm
    if tn is None:
        tn = auto_tn

    grid = (pl.cdiv(N, tm), pl.cdiv(D_out, tn))

    out = pl.pallas_call(
        prenorm_kernel,
        out_shape=jax.ShapeDtypeStruct((N, D_out), x.dtype),
        grid_spec=pltpu.PrefetchScalarGridSpec(
            num_scalar_prefetch=0,
            grid=grid,
            in_specs=[
                pl.BlockSpec((tm, D), lambda i, j: (i, 0)),   # x rows (invariant in j)
                pl.BlockSpec((1, D), lambda i, j: (0, 0)),    # LN gamma
                pl.BlockSpec((1, D), lambda i, j: (0, 0)),    # LN beta
                pl.BlockSpec((D, tn), lambda i, j: (0, j)),   # Linear weight (in, out)
                pl.BlockSpec((1, tn), lambda i, j: (0, j)),   # Linear bias
            ],
            out_specs=pl.BlockSpec((tm, tn), lambda i, j: (i, j)),
            scratch_shapes=[pltpu.VMEM((tm, D), jnp.dtype(mxu_dtype))],
        ),
        compiler_params=pltpu.CompilerParams(
            dimension_semantics=("parallel", "arbitrary"),
            vmem_limit_bytes=int(budget),
        ),
    )(x2, gamma2, beta2, wt, bias2)
    return out.reshape(B, S, D_out)


def prenorm_reference(x, gamma, beta, w, bias):
    """Pure-JAX reference matching PyTorch semantics (high-precision matmul)."""
    xf = x.astype(jnp.float32)
    mean = jnp.mean(xf, axis=-1, keepdims=True)
    var = jnp.mean((xf - mean) ** 2, axis=-1, keepdims=True)
    xn = (xf - mean) * lax.rsqrt(var + EPS)
    xn = xn * gamma.astype(jnp.float32) + beta.astype(jnp.float32)
    y = jnp.einsum("bsd,od->bso", xn, w.astype(jnp.float32),
                   precision=lax.Precision.HIGHEST)
    return (y + bias.astype(jnp.float32)).astype(x.dtype)


if __name__ == "__main__":
    # Small but lane-dense shape: D is a multiple of 128 so output stores are
    # unmasked full-lane writes.
    B, S, D = 2, 8, 128

    key = jax.random.PRNGKey(0)
    kx, kg, kbeta, kw, kb = jax.random.split(key, 5)

    x = jax.random.normal(kx, (B, S, D), dtype=jnp.float32)

    # Non-trivial LayerNorm affine params so the test exercises them.
    gamma = 1.0 + 0.1 * jax.random.normal(kg, (D,), dtype=jnp.float32)
    beta = 0.05 * jax.random.normal(kbeta, (D,), dtype=jnp.float32)

    # fn = Linear(D, D), deterministic init, PyTorch (out, in) layout.
    w = jax.random.normal(kw, (D, D), dtype=jnp.float32) * 0.05
    bias = jax.random.normal(kb, (D,), dtype=jnp.float32) * 0.01

    out = prenorm_linear(x, gamma, beta, w, bias)
    out = jax.block_until_ready(out)

    ref = prenorm_reference(x, gamma, beta, w, bias)
    assert out.shape == (B, S, D)
    max_err = float(jnp.max(jnp.abs(out.astype(jnp.float32) - ref.astype(jnp.float32))))
    # Tolerance accounts for bf16 MXU operands (f32 accumulation).
    assert jnp.allclose(out, ref, atol=2e-2, rtol=2e-2), \
        f"mismatch vs reference (max abs err {max_err})"

    print("KERNEL_OK")
</pallas_src>

<mosaic_0001>
module attributes {stable_mosaic.version = 11 : i64} {
  func.func @prenorm_kernel(%arg0: i32, %arg1: i32, %arg2: memref<16x128xf32, #tpu.memory_space<vmem>>, %arg3: memref<1x128xf32, #tpu.memory_space<vmem>>, %arg4: memref<1x128xf32, #tpu.memory_space<vmem>>, %arg5: memref<128x128xbf16, #tpu.memory_space<vmem>>, %arg6: memref<1x128xf32, #tpu.memory_space<vmem>>, %arg7: memref<16x128xf32, #tpu.memory_space<vmem>>, %arg8: memref<16x128xbf16, #tpu.memory_space<vmem>>) attributes {dimension_semantics = [#tpu.dimension_semantics<parallel>, #tpu.dimension_semantics<arbitrary>], iteration_bounds = array<i64: 1, 1>, scalar_prefetch = 0 : i64, scratch_operands = 1 : i64, tpu.core_type = #tpu.core_type<tc>, window_params = [{transform_indices = @transform_0, window_bounds = array<i64: 16, 128>}, {pipeline_mode = #tpu.pipeline_mode<synchronous>, transform_indices = @transform_1, window_bounds = array<i64: 1, 128>}, {pipeline_mode = #tpu.pipeline_mode<synchronous>, transform_indices = @transform_2, window_bounds = array<i64: 1, 128>}, {transform_indices = @transform_3, window_bounds = array<i64: 128, 128>}, {transform_indices = @transform_4, window_bounds = array<i64: 1, 128>}, {transform_indices = @transform_5, window_bounds = array<i64: 16, 128>}]} {
    %c0_i32 = arith.constant 0 : i32
    %0 = arith.cmpi eq, %arg1, %c0_i32 : i32
    %1 = arith.extui %0 : i1 to i32
    %c0_i32_0 = arith.constant 0 : i32
    %2 = arith.cmpi ne, %1, %c0_i32_0 : i32
    scf.if %2 {
      %c0_8 = arith.constant 0 : index
      %c0_9 = arith.constant 0 : index
      %10 = vector.load %arg2[%c0_8, %c0_9] : memref<16x128xf32, #tpu.memory_space<vmem>>, vector<16x128xf32>
      %cst_10 = arith.constant dense<0.000000e+00> : vector<16xf32>
      %11 = vector.multi_reduction <add>, %10, %cst_10 [1] : vector<16x128xf32> to vector<16xf32>
      %12 = vector.shape_cast %11 : vector<16xf32> to vector<16x1xf32>
      %cst_11 = arith.constant 1.280000e+02 : f32
      %13 = vector.broadcast %cst_11 : f32 to vector<16x1xf32>
      %14 = arith.divf %12, %13 : vector<16x1xf32>
      %15 = vector.broadcast %14 : vector<16x1xf32> to vector<16x128xf32>
      %16 = arith.subf %10, %15 : vector<16x128xf32>
      %17 = arith.mulf %16, %16 : vector<16x128xf32>
      %cst_12 = arith.constant dense<0.000000e+00> : vector<16xf32>
      %18 = vector.multi_reduction <add>, %17, %cst_12 [1] : vector<16x128xf32> to vector<16xf32>
      %19 = vector.shape_cast %18 : vector<16xf32> to vector<16x1xf32>
      %cst_13 = arith.constant 1.280000e+02 : f32
      %20 = vector.broadcast %cst_13 : f32 to vector<16x1xf32>
      %21 = arith.divf %19, %20 : vector<16x1xf32>
      %cst_14 = arith.constant 9.99999974E-6 : f32
      %22 = vector.broadcast %cst_14 : f32 to vector<16x1xf32>
      %23 = arith.addf %21, %22 : vector<16x1xf32>
      %24 = math.rsqrt %23 : vector<16x1xf32>
      %25 = vector.broadcast %24 : vector<16x1xf32> to vector<16x128xf32>
      %26 = arith.mulf %16, %25 : vector<16x128xf32>
      %c0_15 = arith.constant 0 : index
      %c0_16 = arith.constant 0 : index
      %27 = vector.load %arg3[%c0_15, %c0_16] : memref<1x128xf32, #tpu.memory_space<vmem>>, vector<1x128xf32>
      %28 = vector.broadcast %27 : vector<1x128xf32> to vector<16x128xf32>
      %29 = arith.mulf %26, %28 : vector<16x128xf32>
      %c0_17 = arith.constant 0 : index
      %c0_18 = arith.constant 0 : index
      %30 = vector.load %arg4[%c0_17, %c0_18] : memref<1x128xf32, #tpu.memory_space<vmem>>, vector<1x128xf32>
      %31 = vector.broadcast %30 : vector<1x128xf32> to vector<16x128xf32>
      %32 = arith.addf %29, %31 : vector<16x128xf32>
      %33 = arith.truncf %32 : vector<16x128xf32> to vector<16x128xbf16>
      %c0_19 = arith.constant 0 : index
      %c0_20 = arith.constant 0 : index
      %34 = vector.load %arg8[%c0_19, %c0_20] : memref<16x128xbf16, #tpu.memory_space<vmem>>, vector<16x128xbf16>
      tpu.vector_store %arg8[%c0_19, %c0_20], %33 {strides = array<i32>} : memref<16x128xbf16, #tpu.memory_space<vmem>>, vector<16x128xbf16>,
    } else {
    }
    %c0 = arith.constant 0 : index
    %c0_1 = arith.constant 0 : index
    %3 = vector.load %arg8[%c0, %c0_1] : memref<16x128xbf16, #tpu.memory_space<vmem>>, vector<16x128xbf16>
    %c0_2 = arith.constant 0 : index
    %c0_3 = arith.constant 0 : index
    %4 = vector.load %arg5[%c0_2, %c0_3] : memref<128x128xbf16, #tpu.memory_space<vmem>>, vector<128x128xbf16>
    %cst = arith.constant dense<0.000000e+00> : vector<16x128xf32>
    %5 = tpu.matmul %3, %4, %cst {dimension_numbers = #tpu.dot_dimension_numbers<[1], [0], [0], [1], [0, 0, 1, 1], [], []>} : vector<16x128xbf16>, vector<128x128xbf16>, vector<16x128xf32> -> vector<16x128xf32>
    %c0_4 = arith.constant 0 : index
    %c0_5 = arith.constant 0 : index
    %6 = vector.load %arg6[%c0_4, %c0_5] : memref<1x128xf32, #tpu.memory_space<vmem>>, vector<1x128xf32>
    %7 = vector.broadcast %6 : vector<1x128xf32> to vector<16x128xf32>
    %8 = arith.addf %5, %7 : vector<16x128xf32>
    %c0_6 = arith.constant 0 : index
    %c0_7 = arith.constant 0 : index
    %9 = vector.load %arg7[%c0_6, %c0_7] : memref<16x128xf32, #tpu.memory_space<vmem>>, vector<16x128xf32>
    tpu.vector_store %arg7[%c0_6, %c0_7], %8 {strides = array<i32>} : memref<16x128xf32, #tpu.memory_space<vmem>>, vector<16x128xf32>,
    return
  }
  func.func @transform_0(%arg0: i32, %arg1: i32) -> (i32, i32) {
    %c0_i32 = arith.constant 0 : i32
    %c0_i32_0 = arith.constant 0 : i32
    return %arg0, %c0_i32 : i32, i32
  }
  func.func @transform_1(%arg0: i32, %arg1: i32) -> (i32, i32) {
    %c0_i32 = arith.constant 0 : i32
    %c0_i32_0 = arith.constant 0 : i32
    %c0_i32_1 = arith.constant 0 : i32
    return %c0_i32, %c0_i32_0 : i32, i32
  }
  func.func @transform_2(%arg0: i32, %arg1: i32) -> (i32, i32) {
    %c0_i32 = arith.constant 0 : i32
    %c0_i32_0 = arith.constant 0 : i32
    %c0_i32_1 = arith.constant 0 : i32
    return %c0_i32, %c0_i32_0 : i32, i32
  }
  func.func @transform_3(%arg0: i32, %arg1: i32) -> (i32, i32) {
    %c0_i32 = arith.constant 0 : i32
    %c0_i32_0 = arith.constant 0 : i32
    return %c0_i32, %arg1 : i32, i32
  }
  func.func @transform_4(%arg0: i32, %arg1: i32) -> (i32, i32) {
    %c0_i32 = arith.constant 0 : i32
    %c0_i32_0 = arith.constant 0 : i32
    return %c0_i32, %arg1 : i32, i32
  }
  func.func @transform_5(%arg0: i32, %arg1: i32) -> (i32, i32) {
    %c0_i32 = arith.constant 0 : i32
    return %arg0, %arg1 : i32, i32
  }
}

</mosaic_0001>

<llo_original>
// kernel: tpu_custom_call.1
$region0: #{tpu_custom_call.1}
  #allocation0 [shape = 'u32[]', space=smem, size = 0x4, offset = 0x4, fixed_abs, tag = 'smem constant byte address 0x4 - core index']
  #allocation1 [shape = 'u32[144,128]{1,0:T(1,128)}', space=vmem, size = 0x12000, scoped, tag = 'internal scratch']
  #allocation2 [shape = 'bf16[16,128]{1,0:T(16,128)(2,1)}', space=vmem, size = 0x1000, scoped, tag = 'scratch operand']
  %s0 = inlined_call_operand.hbm [shape: f32[16,128], index: 0, kind: input, shape index: {}]
  %s1 = inlined_call_operand.vmem [shape: f32[1,128], index: 1, kind: input, shape index: {}]
  %s2 = inlined_call_operand.vmem [shape: f32[1,128], index: 2, kind: input, shape index: {}]
  %s3 = inlined_call_operand.hbm [shape: bf16[128,128], index: 3, kind: input, shape index: {}]
  %s4 = inlined_call_operand.vmem [shape: f32[1,128], index: 4, kind: input, shape index: {}]
  %s5 = inlined_call_operand.hbm [shape: f32[16,128], index: 5, kind: output, shape index: {}]
  %s6 = sld [smem:[#allocation0]]
  $region42: #{tpu_custom_call.1} parent=0
    _
  %s8 = ssub.s32 1, %s6
  %s9 = scalar_select 0, %s8, %s6
  $region1: #{tpu_custom_call.1} parent=0
    #allocation3 [shape = 'u8[8192]{0}', space=vmem, size = 0x2000, scoped, tag = 'input window, operand 0, single buffered']
    #allocation4 [shape = 's32[1]{0}', space=sflag, size = 0x4, scoped, tag = 'scoped memory for tpu_custom_call.1']
    #allocation5 [shape = 's32[1]{0}', space=sflag, size = 0x4, scoped, tag = 'scoped memory for tpu_custom_call.1']
    #allocation6 [shape = 'u8[32768]{0}', space=vmem, size = 0x8000, scoped, tag = 'input window, operand 3, single buffered']
    #allocation7 [shape = 's32[1]{0}', space=sflag, size = 0x4, scoped, tag = 'scoped memory for tpu_custom_call.1']
    #allocation8 [shape = 'u8[8192]{0}', space=vmem, size = 0x2000, scoped, tag = 'output window, operand 0, single buffered']
    %10 = vsyncpa [#allocation4], 0
    %11 = vsyncpa [#allocation7], 0
    %12 = vsyncpa [#allocation5], 0
    // Predicated region
    $region2: #{tpu_custom_call.1} parent=1 // pred_check
      _
    $region3: #{tpu_custom_call.1} parent=1 // pred_check_branch
      %14 = sbr.rel (0) target = $region5
    $region4: #{tpu_custom_call.1} parent=1 // pred_region
      %s16 = ssub.s32 256, 256
      %17 = vsyncadd [#allocation4], %s16
      %s18 = sshll.u32 [#allocation3], 4
      %s19 = int_to_ptr.vmem [resolvable:$true] %s18
      %24 = dma.hbm_to_vmem [thread:$0]  %s0, 256, %s19, [#allocation4], 128, 128, 8
    $region5: #{tpu_custom_call.1} parent=1 // pred_fallthru
      _
    // Predicated region
    $region6: #{tpu_custom_call.1} parent=1 // pred_check
      _
    $region7: #{tpu_custom_call.1} parent=1 // pred_check_branch
      %26 = sbr.rel (0) target = $region9
    $region8: #{tpu_custom_call.1} parent=1 // pred_region
      _
    $region9: #{tpu_custom_call.1} parent=1 // pred_fallthru
      _
    // Predicated region
    $region10: #{tpu_custom_call.1} parent=1 // pred_check
      _
    $region11: #{tpu_custom_call.1} parent=1 // pred_check_branch
      %28 = sbr.rel (0) target = $region13
    $region12: #{tpu_custom_call.1} parent=1 // pred_region
      _
    $region13: #{tpu_custom_call.1} parent=1 // pred_fallthru
      _
    // Predicated region
    $region14: #{tpu_custom_call.1} parent=1 // pred_check
      _
    $region15: #{tpu_custom_call.1} parent=1 // pred_check_branch
      %30 = sbr.rel (0) target = $region17
    $region16: #{tpu_custom_call.1} parent=1 // pred_region
      %s32 = ssub.s32 1024, 1024
      %33 = vsyncadd [#allocation7], %s32
      %s34 = sshll.u32 [#allocation6], 4
      %s35 = int_to_ptr.vmem [resolvable:$true] %s34
      %40 = dma.hbm_to_vmem [thread:$0]  %s3, 1024, %s35, [#allocation7], 64, 64, 4
    $region17: #{tpu_custom_call.1} parent=1 // pred_fallthru
      _
    // Predicated region
    $region18: #{tpu_custom_call.1} parent=1 // pred_check
      _
    $region19: #{tpu_custom_call.1} parent=1 // pred_check_branch
      %42 = sbr.rel (0) target = $region21
    $region20: #{tpu_custom_call.1} parent=1 // pred_region
      _
    $region21: #{tpu_custom_call.1} parent=1 // pred_fallthru
      _
    // Predicated region
    $region22: #{tpu_custom_call.1} parent=1 // pred_check
      _
    $region23: #{tpu_custom_call.1} parent=1 // pred_check_branch
      %44 = sbr.rel (0) target = $region25
    $region24: #{tpu_custom_call.1} parent=1 // pred_region
      %45 = dma.done [#allocation4], 256
    $region25: #{tpu_custom_call.1} parent=1 // pred_fallthru
      _
    // Predicated region
    $region26: #{tpu_custom_call.1} parent=1 // pred_check
      _
    $region27: #{tpu_custom_call.1} parent=1 // pred_check_branch
      %47 = sbr.rel (0) target = $region29
    $region28: #{tpu_custom_call.1} parent=1 // pred_region
      %48 = dma.done [#allocation7], 1024
    $region29: #{tpu_custom_call.1} parent=1 // pred_fallthru
      _
    %p50 = scmp.eq.s32.totalorder 0, 0
    // Predicated region
    $region30: #{tpu_custom_call.1} parent=1 // pred_check
      %p51 = pneg %p50
    $region31: #{tpu_custom_call.1} parent=1 // pred_check_branch
      %53 = sbr.rel (%p51) target = $region33
    $region32: #{tpu_custom_call.1} parent=1 // pred_region
      %v54 = vld [vmem:[#allocation3] sm:$0xff]
      %v55 = vld [vmem:[#allocation3 + $0x8] sm:$0xff]
      %56 = vadd.xlane.f32.xlu0 %v54
      %v57 = vpop.xlane.xlu0 %56
      %58 = vadd.xlane.f32.xlu0 %v55
      %v59 = vpop.xlane.xlu0 %58
      %v60 = vrcp.pop 128.0
      %v61 = vmul.f32 %v57, %v60
      %v62 = vmul.f32 %v59, %v60
      %v63 = vsub.f32 %v54, %v61
      %v64 = vsub.f32 %v55, %v62
      %v65 = vmul.f32 %v63, %v63
      %v66 = vmul.f32 %v64, %v64
      %67 = vadd.xlane.f32.xlu0 %v65
      %v68 = vpop.xlane.xlu0 %67
      %69 = vadd.xlane.f32.xlu0 %v66
      %v70 = vpop.xlane.xlu0 %69
      %v71 = vmul.f32 %v68, %v60
      %v72 = vmul.f32 %v70, %v60
      %v73 = vadd.f32 %v71, 1e-05
      %v74 = vadd.f32 %v72, 1e-05
      %v75 = vrsqrt.pop %v73
      %v76 = vrsqrt.pop %v74
      %v77 = vmul.f32 %v63, %v75
      %v78 = vmul.f32 %v64, %v76
      %v79 = vld [vmem:[%s1] sm:$0x1]
      %v81 = vlaneseq
      %v82 = vshrl.u32 %v81, 7
      %v83 = vsub.s32 0, %v82
      %v84 = vrot.slane %v79, %v83
      %v86 = vmul.f32 %v77, %v84
      %v87 = vmul.f32 %v78, %v84
      %v88 = vld [vmem:[%s2] sm:$0x1]
      %v90 = vlaneseq
      %v91 = vshrl.u32 %v90, 7
      %v92 = vsub.s32 0, %v91
      %v93 = vrot.slane %v88, %v92
      %v95 = vadd.f32 %v86, %v93
      %v96 = vadd.f32 %v87, %v93
      %v97 = vpack.c.bf16 %v96, %v95
      %98 = vst [vmem:[#allocation2] sm:$0xff] %v97
    $region33: #{tpu_custom_call.1} parent=1 // pred_fallthru
      _
    %v99 = vld [vmem:[#allocation2] sm:$0xff]
    %v100 = vld [vmem:[#allocation6] sm:$0xf]
    %v101 = vld [vmem:[#allocation6 + $0x4] sm:$0xf]
    %v102 = vld [vmem:[#allocation6 + $0x8] sm:$0xf]
    %v103 = vld [vmem:[#allocation6 + $0xc] sm:$0xf]
    %v104 = vld [vmem:[#allocation6 + $0x10] sm:$0xf]
    %v105 = vld [vmem:[#allocation6 + $0x14] sm:$0xf]
    %v106 = vld [vmem:[#allocation6 + $0x18] sm:$0xf]
    %v107 = vld [vmem:[#allocation6 + $0x1c] sm:$0xf]
    %v108 = vld [vmem:[#allocation6 + $0x20] sm:$0xf]
    %v109 = vld [vmem:[#allocation6 + $0x24] sm:$0xf]
    %v110 = vld [vmem:[#allocation6 + $0x28] sm:$0xf]
    %v111 = vld [vmem:[#allocation6 + $0x2c] sm:$0xf]
    %v112 = vld [vmem:[#allocation6 + $0x30] sm:$0xf]
    %v113 = vld [vmem:[#allocation6 + $0x34] sm:$0xf]
    %v114 = vld [vmem:[#allocation6 + $0x38] sm:$0xf]
    %v115 = vld [vmem:[#allocation6 + $0x3c] sm:$0xf]
    %v116 = vld [vmem:[%s4] sm:$0x1]
    %v118 = vlaneseq
    %v119 = vshrl.u32 %v118, 7
    %v120 = vsub.s32 0, %v119
    %v121 = vrot.slane %v116, %v120
    %v139 = vunpack.c.l.b16 %v100
    %v140 = vunpack.c.l.b16 %v101
    %v141 = vunpack.c.l.b16 %v102
    %v142 = vunpack.c.l.b16 %v103
    %v143 = vunpack.c.l.b16 %v104
    %v144 = vunpack.c.l.b16 %v105
    %v145 = vunpack.c.l.b16 %v106
    %v146 = vunpack.c.l.b16 %v107
    %v147 = vunpack.c.l.b16 %v108
    %v148 = vunpack.c.l.b16 %v109
    %v149 = vunpack.c.l.b16 %v110
    %v150 = vunpack.c.l.b16 %v111
    %v151 = vunpack.c.l.b16 %v112
    %v152 = vunpack.c.l.b16 %v113
    %v153 = vunpack.c.l.b16 %v114
    %v154 = vunpack.c.l.b16 %v115
    %v155 = vpack.c.b16 %v140, %v139
    %v156 = vpack.c.b16 %v142, %v141
    %v157 = vpack.c.b16 %v144, %v143
    %v158 = vpack.c.b16 %v146, %v145
    %v159 = vpack.c.b16 %v148, %v147
    %v160 = vpack.c.b16 %v150, %v149
    %v161 = vpack.c.b16 %v152, %v151
    %v162 = vpack.c.b16 %v154, %v153
    %171 = vmatprep.subr.bf16.mxu0 0
    %172 = vmatpush1.bf16.msra.mxu0 %v155
    %173 = vmatprep.subr.bf16.mxu0 0
    %174 = vmatpush1.bf16.msra.mxu0 %v156
    %175 = vmatprep.subr.bf16.mxu0 0
    %176 = vmatpush1.bf16.msra.mxu0 %v157
    %177 = vmatprep.subr.bf16.mxu0 0
    %178 = vmatpush1.bf16.msra.mxu0 %v158
    %179 = vmatprep.subr.bf16.mxu0 0
    %180 = vmatpush1.bf16.msra.mxu0 %v159
    %181 = vmatprep.subr.bf16.mxu0 0
    %182 = vmatpush1.bf16.msra.mxu0 %v160
    %183 = vmatprep.subr.bf16.mxu0 0
    %184 = vmatpush1.bf16.msra.mxu0 %v161
    %185 = vmatprep.subr.bf16.mxu0 0
    %186 = vmatpush1.bf16.msra.mxu0 %v162
    %187 = vmatprep.subr.bf16.mxu0 0
    %188 = vmatpush1.bf16.msra.mxu0 0
    %189 = vmatprep.subr.bf16.mxu0 0
    %190 = vmatpush1.bf16.msra.mxu0 0
    %191 = vmatprep.subr.bf16.mxu0 0
    %192 = vmatpush1.bf16.msra.mxu0 0
    %193 = vmatprep.subr.bf16.mxu0 0
    %194 = vmatpush1.bf16.msra.mxu0 0
    %195 = vmatprep.subr.bf16.mxu0 0
    %196 = vmatpush1.bf16.msra.mxu0 0
    %197 = vmatprep.subr.bf16.mxu0 0
    %198 = vmatpush1.bf16.msra.mxu0 0
    %199 = vmatprep.subr.bf16.mxu0 0
    %200 = vmatpush1.bf16.msra.mxu0 0
    %201 = vmatprep.subr.bf16.mxu0 0
    %202 = vmatpush1.bf16.msra.mxu0 0
    %203 = vmatprep.mubr.bf16.mxu0 0
    %204 = vmatmul.mubr.bf16.gmra.mrb[0].mxu0 %v99
    %v205 = vpop.f32.mrb[0].mxu0
    %v206 = vadd.f32 %v121, %v205
    %v207 = vpop.f32.mrb[0].mxu0
    %v208 = vpop.f32.mrb[0].mxu0
    %v209 = vadd.f32 %v121, %v208
    %v210 = vpop.f32.mrb[0].mxu0
    %211 = vdwg.mxu0
    %212 = vst [vmem:[#allocation8] sm:$0xff] %v206
    %213 = vst [vmem:[#allocation8 + $0x8] sm:$0xff] %v209
    // Predicated region
    $region34: #{tpu_custom_call.1} parent=1 // pred_check
      _
    $region35: #{tpu_custom_call.1} parent=1 // pred_check_branch
      %215 = sbr.rel (0) target = $region37
    $region36: #{tpu_custom_call.1} parent=1 // pred_region
      %s217 = ssub.s32 256, 256
      %218 = vsyncadd [#allocation5], %s217
      %s219 = sshll.u32 [#allocation8], 4
      %s220 = int_to_ptr.vmem [resolvable:$true] %s219
      %225 = dma.vmem_to_hbm [thread:$0]  %s220, 256, %s5, [#allocation5], 128, 128, 8
    $region37: #{tpu_custom_call.1} parent=1 // pred_fallthru
      _
    // Predicated region
    $region38: #{tpu_custom_call.1} parent=1 // pred_check
      _
    $region39: #{tpu_custom_call.1} parent=1 // pred_check_branch
      %227 = sbr.rel (0) target = $region41
    $region40: #{tpu_custom_call.1} parent=1 // pred_region
      %228 = dma.done [#allocation5], 256
    $region41: #{tpu_custom_call.1} parent=1 // pred_fallthru
      _
    %229 = vsyncpa [#allocation4], 1
    %230 = vsyncpa [#allocation7], 1
    %231 = vsyncpa [#allocation5], 1

</llo_original>
